<compile_context>
chip_gen: v6e
topology: v6e:2x2x1
jax: 0.10.0
libtpu: 0.0.40
codegen_flags: <defaults>
</compile_context>

<pallas_src>
import functools
import math

import jax
import jax.numpy as jnp
from jax.experimental import pallas as pl
from jax.experimental.pallas import tpu as pltpu


# ----------------------------------------------------------------------------
# helpers
# ----------------------------------------------------------------------------
def _round_up(v, m):
    return (v + m - 1) // m * m


def _pad_dim(dim, max_tile=512):
    """Return (padded_dim, tile) with tile | padded_dim and tile % 128 == 0.

    Small dims are padded to the next multiple of 128 and handled as a single
    tile; large dims are padded to a multiple of `max_tile` and tiled at
    `max_tile` (conservative for v7x's 64 MiB VMEM, big enough to sit near the
    HBM roofline on v5e/v6e).
    """
    if dim >= max_tile:
        return _round_up(dim, max_tile), max_tile
    p = _round_up(dim, 128)
    return p, p


# ----------------------------------------------------------------------------
# kernel bodies
# ----------------------------------------------------------------------------
def _matmul_single_kernel(x_ref, w_ref, out_ref):
    """support = x @ W, whole K in one block: write straight to the output."""
    out_ref[...] = jnp.dot(
        x_ref[...], w_ref[...], preferred_element_type=jnp.float32
    ).astype(out_ref.dtype)


def _matmul_kernel(x_ref, w_ref, out_ref, acc_ref):
    """support = x @ W, tiled over (row tiles, K tiles); f32 accumulation."""
    k = pl.program_id(1)

    @pl.when(k == 0)
    def _():
        acc_ref[...] = jnp.zeros_like(acc_ref)

    acc_ref[...] += jnp.dot(
        x_ref[...], w_ref[...], preferred_element_type=jnp.float32
    )

    @pl.when(k == pl.num_programs(1) - 1)
    def _():
        out_ref[...] = acc_ref[...].astype(out_ref.dtype)


def _aggregate_single_kernel(adj_ref, s_ref, b_ref, out_ref, *, relu):
    """out = [relu](adj @ support + b), whole N in one K block (fast path)."""
    r = jnp.dot(adj_ref[...], s_ref[...], preferred_element_type=jnp.float32)
    r = r + b_ref[...]
    if relu:
        r = jnp.maximum(r, 0.0)
    out_ref[...] = r.astype(out_ref.dtype)


def _aggregate_kernel(adj_ref, s_ref, b_ref, out_ref, acc_ref, *, relu):
    """out = [relu](adj @ support + b), adj streamed as (tm, tk) tiles."""
    k = pl.program_id(1)

    @pl.when(k == 0)
    def _():
        # Fold the bias into the accumulator init -> no epilogue add.
        acc_ref[...] = jnp.broadcast_to(b_ref[...], acc_ref.shape)

    acc_ref[...] += jnp.dot(
        adj_ref[...], s_ref[...], preferred_element_type=jnp.float32
    )

    @pl.when(k == pl.num_programs(1) - 1)
    def _():
        r = acc_ref[...]
        if relu:
            r = jnp.maximum(r, 0.0)
        out_ref[...] = r.astype(out_ref.dtype)


# ----------------------------------------------------------------------------
# pallas_call wrappers
# ----------------------------------------------------------------------------
def _matmul(x, w, *, bm, bk, out_dtype):
    m, kdim = x.shape
    f = w.shape[1]
    nk = kdim // bk

    if nk == 1:
        # Single K block: no scratch accumulator, no reduction axis.
        return pl.pallas_call(
            _matmul_single_kernel,
            out_shape=jax.ShapeDtypeStruct((m, f), out_dtype),
            grid_spec=pltpu.PrefetchScalarGridSpec(
                num_scalar_prefetch=0,
                grid=(m // bm,),
                in_specs=[
                    pl.BlockSpec((bm, kdim), lambda i: (i, 0)),
                    pl.BlockSpec((kdim, f), lambda i: (0, 0)),
                ],
                out_specs=pl.BlockSpec((bm, f), lambda i: (i, 0)),
            ),
            compiler_params=pltpu.CompilerParams(
                dimension_semantics=("parallel",)
            ),
        )(x, w)

    return pl.pallas_call(
        _matmul_kernel,
        out_shape=jax.ShapeDtypeStruct((m, f), out_dtype),
        grid_spec=pltpu.PrefetchScalarGridSpec(
            num_scalar_prefetch=0,
            grid=(m // bm, nk),
            in_specs=[
                pl.BlockSpec((bm, bk), lambda i, k: (i, k)),
                pl.BlockSpec((bk, f), lambda i, k: (k, 0)),
            ],
            out_specs=pl.BlockSpec((bm, f), lambda i, k: (i, 0)),
            scratch_shapes=[pltpu.VMEM((bm, f), jnp.float32)],
        ),
        compiler_params=pltpu.CompilerParams(
            dimension_semantics=("parallel", "arbitrary")
        ),
    )(x, w)


def _aggregate(adj, support, bias, *, tm, tk, relu, out_dtype):
    n = adj.shape[0]
    f = support.shape[1]
    nk = n // tk

    if nk == 1:
        kernel = functools.partial(_aggregate_single_kernel, relu=relu)
        return pl.pallas_call(
            kernel,
            out_shape=jax.ShapeDtypeStruct((n, f), out_dtype),
            grid_spec=pltpu.PrefetchScalarGridSpec(
                num_scalar_prefetch=0,
                grid=(n // tm,),
                in_specs=[
                    pl.BlockSpec((tm, n), lambda i: (i, 0)),   # adj row stripe
                    pl.BlockSpec((n, f), lambda i: (0, 0)),    # full support
                    pl.BlockSpec((1, f), lambda i: (0, 0)),    # bias, resident
                ],
                out_specs=pl.BlockSpec((tm, f), lambda i: (i, 0)),
            ),
            compiler_params=pltpu.CompilerParams(
                dimension_semantics=("parallel",)
            ),
        )(adj, support, bias)

    kernel = functools.partial(_aggregate_kernel, relu=relu)
    return pl.pallas_call(
        kernel,
        out_shape=jax.ShapeDtypeStruct((n, f), out_dtype),
        grid_spec=pltpu.PrefetchScalarGridSpec(
            num_scalar_prefetch=0,
            grid=(n // tm, nk),
            in_specs=[
                pl.BlockSpec((tm, tk), lambda i, k: (i, k)),   # adj tile, streamed
                pl.BlockSpec((tk, f), lambda i, k: (k, 0)),    # support K-slice
                pl.BlockSpec((1, f), lambda i, k: (0, 0)),     # bias, resident
            ],
            out_specs=pl.BlockSpec((tm, f), lambda i, k: (i, 0)),
            scratch_shapes=[pltpu.VMEM((tm, f), jnp.float32)],
        ),
        compiler_params=pltpu.CompilerParams(
            dimension_semantics=("parallel", "arbitrary")
        ),
    )(adj, support, bias)


# ----------------------------------------------------------------------------
# GCN forward
# ----------------------------------------------------------------------------
@jax.jit
def gcn_forward(x, adj, w1, b1, w2, b2):
    """x: (N, nfeat) f32, adj: (N, N) f32 dense normalized adjacency."""
    n, nfeat = x.shape
    nhid = w1.shape[1]
    nclass = w2.shape[1]
    assert adj.shape == (n, n)
    assert w1.shape == (nfeat, nhid)
    assert w2.shape == (nhid, nclass)

    b1 = jnp.reshape(b1, (1, nhid)).astype(jnp.float32)
    b2 = jnp.reshape(b2, (1, nclass)).astype(jnp.float32)

    # Padded sizes + tile choices (all multiples of 128; lane-dense everywhere).
    n_p, tn = _pad_dim(n)
    nfeat_p, tfeat = _pad_dim(nfeat)
    nhid_p, thid = _pad_dim(nhid)
    nclass_p = _round_up(nclass, 128)

    def pad2(a, rows, cols):
        return jnp.pad(a, ((0, rows - a.shape[0]), (0, cols - a.shape[1])))

    # bf16 MXU operands; zero padding keeps the math exact for the valid region
    # (padded adj columns / x columns / W rows are all zero).
    x_p = pad2(x, n_p, nfeat_p).astype(jnp.bfloat16)
    adj_p = pad2(adj, n_p, n_p).astype(jnp.bfloat16)
    w1_p = pad2(w1, nfeat_p, nhid_p).astype(jnp.bfloat16)
    w2_p = pad2(w2, nhid_p, nclass_p).astype(jnp.bfloat16)
    b1_p = pad2(b1, 1, nhid_p)
    b2_p = pad2(b2, 1, nclass_p)

    # ---- layer 1: h = relu(adj @ (x @ W1) + b1) ---------------------------
    support1 = _matmul(x_p, w1_p, bm=tn, bk=tfeat, out_dtype=jnp.bfloat16)
    h = _aggregate(adj_p, support1, b1_p, tm=tn, tk=tn,
                   relu=True, out_dtype=jnp.bfloat16)

    # TODO(synk): torch.dropout(train=True) is stochastic; inference/eval mode
    # (identity) is implemented here.

    # ---- layer 2: out = adj @ (h @ W2) + b2 -------------------------------
    support2 = _matmul(h, w2_p, bm=tn, bk=thid, out_dtype=jnp.bfloat16)
    out_p = _aggregate(adj_p, support2, b2_p, tm=tn, tk=tn,
                       relu=False, out_dtype=jnp.float32)

    return out_p[:n, :nclass]


def init_gcn_params(key, nfeat, nhid, nclass):
    """Deterministic re-implementation of GraphConvolution.reset_parameter."""
    k1, k2, k3, k4 = jax.random.split(key, 4)
    stdv1 = 1.0 / math.sqrt(nhid)
    stdv2 = 1.0 / math.sqrt(nclass)
    w1 = jax.random.uniform(k1, (nfeat, nhid), jnp.float32, -stdv1, stdv1)
    b1 = jax.random.uniform(k2, (1, nhid), jnp.float32, -stdv1, stdv1)
    w2 = jax.random.uniform(k3, (nhid, nclass), jnp.float32, -stdv2, stdv2)
    b2 = jax.random.uniform(k4, (1, nclass), jnp.float32, -stdv2, stdv2)
    return w1, b1, w2, b2


def _reference(x, adj, w1, b1, w2, b2):
    h = jnp.maximum(adj @ (x @ w1) + b1, 0.0)
    return adj @ (h @ w2) + b2


def _make_problem(key, n, nfeat, sparsity=0.9):
    kx, kadj = jax.random.split(key)
    x = jax.random.normal(kx, (n, nfeat), jnp.float32)
    # Symmetric-normalized dense adjacency with self loops: D^-1/2 (A+I) D^-1/2
    a = (jax.random.uniform(kadj, (n, n)) > sparsity).astype(jnp.float32)
    a = jnp.maximum(a, a.T) + jnp.eye(n, dtype=jnp.float32)
    d_inv_sqrt = 1.0 / jnp.sqrt(a.sum(axis=1))
    adj = a * d_inv_sqrt[:, None] * d_inv_sqrt[None, :]
    return x, adj


if __name__ == "__main__":
    key = jax.random.PRNGKey(0)
    k_small, k_big, kp1, kp2 = jax.random.split(key, 4)

    # ---- small synthetic "text-GCN"-style problem (single-tile fast path) ----
    N, NFEAT, NHID, NCLASS = 64, 32, 32, 8
    x, adj = _make_problem(k_small, N, NFEAT, sparsity=0.9)
    w1, b1, w2, b2 = init_gcn_params(kp1, NFEAT, NHID, NCLASS)

    out = jax.block_until_ready(gcn_forward(x, adj, w1, b1, w2, b2))
    ref = _reference(x, adj, w1, b1, w2, b2)
    assert out.shape == (N, NCLASS)
    # bf16 MXU operands with f32 accumulation -> ~1% relative error vs f32 ref.
    assert jnp.allclose(out, ref, atol=3e-2, rtol=3e-2), float(
        jnp.max(jnp.abs(out - ref))
    )

    # ---- larger problem exercising the K-tiled adjacency-streaming path ----
    N2, NFEAT2, NHID2, NCLASS2 = 640, 300, 200, 20
    x2, adj2 = _make_problem(k_big, N2, NFEAT2, sparsity=0.98)
    w1b, b1b, w2b, b2b = init_gcn_params(kp2, NFEAT2, NHID2, NCLASS2)

    out2 = jax.block_until_ready(gcn_forward(x2, adj2, w1b, b1b, w2b, b2b))
    ref2 = _reference(x2, adj2, w1b, b1b, w2b, b2b)
    assert out2.shape == (N2, NCLASS2)
    err2 = float(jnp.max(jnp.abs(out2 - ref2)))
    scale2 = float(jnp.max(jnp.abs(ref2))) + 1e-6
    assert err2 <= 3e-2 * scale2 + 3e-2, err2

    print("KERNEL_OK")
</pallas_src>

<mosaic_0001>
module attributes {stable_mosaic.version = 11 : i64} {
  func.func @_aggregate_single_kernel(%arg0: i32, %arg1: memref<128x128xbf16, #tpu.memory_space<vmem>>, %arg2: memref<128x128xbf16, #tpu.memory_space<vmem>>, %arg3: memref<1x128xf32, #tpu.memory_space<vmem>>, %arg4: memref<128x128xbf16, #tpu.memory_space<vmem>>) attributes {dimension_semantics = [#tpu.dimension_semantics<parallel>], iteration_bounds = array<i64: 1>, scalar_prefetch = 0 : i64, scratch_operands = 0 : i64, tpu.core_type = #tpu.core_type<tc>, window_params = [{transform_indices = @transform_0, window_bounds = array<i64: 128, 128>}, {pipeline_mode = #tpu.pipeline_mode<synchronous>, transform_indices = @transform_1, window_bounds = array<i64: 128, 128>}, {pipeline_mode = #tpu.pipeline_mode<synchronous>, transform_indices = @transform_2, window_bounds = array<i64: 1, 128>}, {transform_indices = @transform_3, window_bounds = array<i64: 128, 128>}]} {
    %c0 = arith.constant 0 : index
    %c0_0 = arith.constant 0 : index
    %0 = vector.load %arg1[%c0, %c0_0] : memref<128x128xbf16, #tpu.memory_space<vmem>>, vector<128x128xbf16>
    %c0_1 = arith.constant 0 : index
    %c0_2 = arith.constant 0 : index
    %1 = vector.load %arg2[%c0_1, %c0_2] : memref<128x128xbf16, #tpu.memory_space<vmem>>, vector<128x128xbf16>
    %cst = arith.constant dense<0.000000e+00> : vector<128x128xf32>
    %2 = tpu.matmul %0, %1, %cst {dimension_numbers = #tpu.dot_dimension_numbers<[1], [0], [0], [1], [0, 0, 1, 1], [], []>} : vector<128x128xbf16>, vector<128x128xbf16>, vector<128x128xf32> -> vector<128x128xf32>
    %c0_3 = arith.constant 0 : index
    %c0_4 = arith.constant 0 : index
    %3 = vector.load %arg3[%c0_3, %c0_4] : memref<1x128xf32, #tpu.memory_space<vmem>>, vector<1x128xf32>
    %4 = vector.broadcast %3 : vector<1x128xf32> to vector<128x128xf32>
    %5 = arith.addf %2, %4 : vector<128x128xf32>
    %cst_5 = arith.constant 0.000000e+00 : f32
    %6 = vector.broadcast %cst_5 : f32 to vector<128x128xf32>
    %7 = arith.maximumf %5, %6 : vector<128x128xf32>
    %8 = arith.truncf %7 : vector<128x128xf32> to vector<128x128xbf16>
    %c0_6 = arith.constant 0 : index
    %c0_7 = arith.constant 0 : index
    %9 = vector.load %arg4[%c0_6, %c0_7] : memref<128x128xbf16, #tpu.memory_space<vmem>>, vector<128x128xbf16>
    tpu.vector_store %arg4[%c0_6, %c0_7], %8 {strides = array<i32>} : memref<128x128xbf16, #tpu.memory_space<vmem>>, vector<128x128xbf16>,
    return
  }
  func.func @transform_0(%arg0: i32) -> (i32, i32) {
    %c0_i32 = arith.constant 0 : i32
    %c0_i32_0 = arith.constant 0 : i32
    return %arg0, %c0_i32 : i32, i32
  }
  func.func @transform_1(%arg0: i32) -> (i32, i32) {
    %c0_i32 = arith.constant 0 : i32
    %c0_i32_0 = arith.constant 0 : i32
    %c0_i32_1 = arith.constant 0 : i32
    return %c0_i32, %c0_i32_0 : i32, i32
  }
  func.func @transform_2(%arg0: i32) -> (i32, i32) {
    %c0_i32 = arith.constant 0 : i32
    %c0_i32_0 = arith.constant 0 : i32
    %c0_i32_1 = arith.constant 0 : i32
    return %c0_i32, %c0_i32_0 : i32, i32
  }
  func.func @transform_3(%arg0: i32) -> (i32, i32) {
    %c0_i32 = arith.constant 0 : i32
    %c0_i32_0 = arith.constant 0 : i32
    return %arg0, %c0_i32 : i32, i32
  }
}

module attributes {stable_mosaic.version = 11 : i64} {
  func.func @_matmul_single_kernel(%arg0: i32, %arg1: memref<128x128xbf16, #tpu.memory_space<vmem>>, %arg2: memref<128x128xbf16, #tpu.memory_space<vmem>>, %arg3: memref<128x128xbf16, #tpu.memory_space<vmem>>) attributes {dimension_semantics = [#tpu.dimension_semantics<parallel>], iteration_bounds = array<i64: 1>, scalar_prefetch = 0 : i64, scratch_operands = 0 : i64, tpu.core_type = #tpu.core_type<tc>, window_params = [{transform_indices = @transform_0, window_bounds = array<i64: 128, 128>}, {pipeline_mode = #tpu.pipeline_mode<synchronous>, transform_indices = @transform_1, window_bounds = array<i64: 128, 128>}, {transform_indices = @transform_2, window_bounds = array<i64: 128, 128>}]} {
    %c0 = arith.constant 0 : index
    %c0_0 = arith.constant 0 : index
    %0 = vector.load %arg1[%c0, %c0_0] : memref<128x128xbf16, #tpu.memory_space<vmem>>, vector<128x128xbf16>
    %c0_1 = arith.constant 0 : index
    %c0_2 = arith.constant 0 : index
    %1 = vector.load %arg2[%c0_1, %c0_2] : memref<128x128xbf16, #tpu.memory_space<vmem>>, vector<128x128xbf16>
    %cst = arith.constant dense<0.000000e+00> : vector<128x128xf32>
    %2 = tpu.matmul %0, %1, %cst {dimension_numbers = #tpu.dot_dimension_numbers<[1], [0], [0], [1], [0, 0, 1, 1], [], []>} : vector<128x128xbf16>, vector<128x128xbf16>, vector<128x128xf32> -> vector<128x128xf32>
    %3 = arith.truncf %2 : vector<128x128xf32> to vector<128x128xbf16>
    %c0_3 = arith.constant 0 : index
    %c0_4 = arith.constant 0 : index
    %4 = vector.load %arg3[%c0_3, %c0_4] : memref<128x128xbf16, #tpu.memory_space<vmem>>, vector<128x128xbf16>
    tpu.vector_store %arg3[%c0_3, %c0_4], %3 {strides = array<i32>} : memref<128x128xbf16, #tpu.memory_space<vmem>>, vector<128x128xbf16>,
    return
  }
  func.func @transform_0(%arg0: i32) -> (i32, i32) {
    %c0_i32 = arith.constant 0 : i32
    %c0_i32_0 = arith.constant 0 : i32
    return %arg0, %c0_i32 : i32, i32
  }
  func.func @transform_1(%arg0: i32) -> (i32, i32) {
    %c0_i32 = arith.constant 0 : i32
    %c0_i32_0 = arith.constant 0 : i32
    %c0_i32_1 = arith.constant 0 : i32
    return %c0_i32, %c0_i32_0 : i32, i32
  }
  func.func @transform_2(%arg0: i32) -> (i32, i32) {
    %c0_i32 = arith.constant 0 : i32
    %c0_i32_0 = arith.constant 0 : i32
    return %arg0, %c0_i32 : i32, i32
  }
}

module attributes {stable_mosaic.version = 11 : i64} {
  func.func @_aggregate_single_kernel(%arg0: i32, %arg1: memref<128x128xbf16, #tpu.memory_space<vmem>>, %arg2: memref<128x128xbf16, #tpu.memory_space<vmem>>, %arg3: memref<1x128xf32, #tpu.memory_space<vmem>>, %arg4: memref<128x128xf32, #tpu.memory_space<vmem>>) attributes {dimension_semantics = [#tpu.dimension_semantics<parallel>], iteration_bounds = array<i64: 1>, scalar_prefetch = 0 : i64, scratch_operands = 0 : i64, tpu.core_type = #tpu.core_type<tc>, window_params = [{transform_indices = @transform_0, window_bounds = array<i64: 128, 128>}, {pipeline_mode = #tpu.pipeline_mode<synchronous>, transform_indices = @transform_1, window_bounds = array<i64: 128, 128>}, {pipeline_mode = #tpu.pipeline_mode<synchronous>, transform_indices = @transform_2, window_bounds = array<i64: 1, 128>}, {transform_indices = @transform_3, window_bounds = array<i64: 128, 128>}]} {
    %c0 = arith.constant 0 : index
    %c0_0 = arith.constant 0 : index
    %0 = vector.load %arg1[%c0, %c0_0] : memref<128x128xbf16, #tpu.memory_space<vmem>>, vector<128x128xbf16>
    %c0_1 = arith.constant 0 : index
    %c0_2 = arith.constant 0 : index
    %1 = vector.load %arg2[%c0_1, %c0_2] : memref<128x128xbf16, #tpu.memory_space<vmem>>, vector<128x128xbf16>
    %cst = arith.constant dense<0.000000e+00> : vector<128x128xf32>
    %2 = tpu.matmul %0, %1, %cst {dimension_numbers = #tpu.dot_dimension_numbers<[1], [0], [0], [1], [0, 0, 1, 1], [], []>} : vector<128x128xbf16>, vector<128x128xbf16>, vector<128x128xf32> -> vector<128x128xf32>
    %c0_3 = arith.constant 0 : index
    %c0_4 = arith.constant 0 : index
    %3 = vector.load %arg3[%c0_3, %c0_4] : memref<1x128xf32, #tpu.memory_space<vmem>>, vector<1x128xf32>
    %4 = vector.broadcast %3 : vector<1x128xf32> to vector<128x128xf32>
    %5 = arith.addf %2, %4 : vector<128x128xf32>
    %c0_5 = arith.constant 0 : index
    %c0_6 = arith.constant 0 : index
    %6 = vector.load %arg4[%c0_5, %c0_6] : memref<128x128xf32, #tpu.memory_space<vmem>>, vector<128x128xf32>
    tpu.vector_store %arg4[%c0_5, %c0_6], %5 {strides = array<i32>} : memref<128x128xf32, #tpu.memory_space<vmem>>, vector<128x128xf32>,
    return
  }
  func.func @transform_0(%arg0: i32) -> (i32, i32) {
    %c0_i32 = arith.constant 0 : i32
    %c0_i32_0 = arith.constant 0 : i32
    return %arg0, %c0_i32 : i32, i32
  }
  func.func @transform_1(%arg0: i32) -> (i32, i32) {
    %c0_i32 = arith.constant 0 : i32
    %c0_i32_0 = arith.constant 0 : i32
    %c0_i32_1 = arith.constant 0 : i32
    return %c0_i32, %c0_i32_0 : i32, i32
  }
  func.func @transform_2(%arg0: i32) -> (i32, i32) {
    %c0_i32 = arith.constant 0 : i32
    %c0_i32_0 = arith.constant 0 : i32
    %c0_i32_1 = arith.constant 0 : i32
    return %c0_i32, %c0_i32_0 : i32, i32
  }
  func.func @transform_3(%arg0: i32) -> (i32, i32) {
    %c0_i32 = arith.constant 0 : i32
    %c0_i32_0 = arith.constant 0 : i32
    return %arg0, %c0_i32 : i32, i32
  }
}

</mosaic_0001>

<llo_original>
// kernel: gcn_forward.5
$region0: #{gcn_forward.5}
  #allocation0 [shape = 'u32[]', space=smem, size = 0x4, offset = 0x4, fixed_abs, tag = 'smem constant byte address 0x4 - core index']
  #allocation1 [shape = 'u32[144,128]{1,0:T(1,128)}', space=vmem, size = 0x12000, scoped, tag = 'internal scratch']
  %s0 = inlined_call_operand.vmem [shape: bf16[128,128], index: 0, kind: input, shape index: {}]
  %s1 = inlined_call_operand.vmem [shape: bf16[128,128], index: 1, kind: input, shape index: {}]
  %s2 = inlined_call_operand.vmem [shape: f32[1,128], index: 2, kind: input, shape index: {}]
  %s3 = inlined_call_operand.vmem [shape: bf16[128,128], index: 3, kind: output, shape index: {}]
  %s4 = sld [smem:[#allocation0]]
  $region22: #{gcn_forward.5} parent=0
    _
  %s6 = ssub.s32 1, %s4
  %s7 = scalar_select 0, %s6, %s4
  // Predicated region
  $region2: #{gcn_forward.5} parent=0 // pred_check
    _
  $region3: #{gcn_forward.5} parent=0 // pred_check_branch
    %9 = sbr.rel (0) target = $region5
  $region4: #{gcn_forward.5} parent=0 // pred_region
    _
  $region5: #{gcn_forward.5} parent=0 // pred_fallthru
    _
  // Predicated region
  $region6: #{gcn_forward.5} parent=0 // pred_check
    _
  $region7: #{gcn_forward.5} parent=0 // pred_check_branch
    %11 = sbr.rel (0) target = $region9
  $region8: #{gcn_forward.5} parent=0 // pred_region
    _
  $region9: #{gcn_forward.5} parent=0 // pred_fallthru
    _
  // Predicated region
  $region10: #{gcn_forward.5} parent=0 // pred_check
    _
  $region11: #{gcn_forward.5} parent=0 // pred_check_branch
    %13 = sbr.rel (0) target = $region13
  $region12: #{gcn_forward.5} parent=0 // pred_region
    _
  $region13: #{gcn_forward.5} parent=0 // pred_fallthru
    _
  %v15 = vld [vmem:[%s0] sm:$0xf]
  %v16 = vld [vmem:[%s0 + $0x4] sm:$0xf]
  %v17 = vld [vmem:[%s0 + $0x8] sm:$0xf]
  %v18 = vld [vmem:[%s0 + $0xc] sm:$0xf]
  %v19 = vld [vmem:[%s0 + $0x10] sm:$0xf]
  %v20 = vld [vmem:[%s0 + $0x14] sm:$0xf]
  %v21 = vld [vmem:[%s0 + $0x18] sm:$0xf]
  %v22 = vld [vmem:[%s0 + $0x1c] sm:$0xf]
  %v23 = vld [vmem:[%s0 + $0x20] sm:$0xf]
  %v24 = vld [vmem:[%s0 + $0x24] sm:$0xf]
  %v25 = vld [vmem:[%s0 + $0x28] sm:$0xf]
  %v26 = vld [vmem:[%s0 + $0x2c] sm:$0xf]
  %v27 = vld [vmem:[%s0 + $0x30] sm:$0xf]
  %v28 = vld [vmem:[%s0 + $0x34] sm:$0xf]
  %v29 = vld [vmem:[%s0 + $0x38] sm:$0xf]
  %v30 = vld [vmem:[%s0 + $0x3c] sm:$0xf]
  %v31 = vld [vmem:[%s1] sm:$0xf]
  %v32 = vld [vmem:[%s1 + $0x4] sm:$0xf]
  %v33 = vld [vmem:[%s1 + $0x8] sm:$0xf]
  %v34 = vld [vmem:[%s1 + $0xc] sm:$0xf]
  %v35 = vld [vmem:[%s1 + $0x10] sm:$0xf]
  %v36 = vld [vmem:[%s1 + $0x14] sm:$0xf]
  %v37 = vld [vmem:[%s1 + $0x18] sm:$0xf]
  %v38 = vld [vmem:[%s1 + $0x1c] sm:$0xf]
  %v39 = vld [vmem:[%s1 + $0x20] sm:$0xf]
  %v40 = vld [vmem:[%s1 + $0x24] sm:$0xf]
  %v41 = vld [vmem:[%s1 + $0x28] sm:$0xf]
  %v42 = vld [vmem:[%s1 + $0x2c] sm:$0xf]
  %v43 = vld [vmem:[%s1 + $0x30] sm:$0xf]
  %v44 = vld [vmem:[%s1 + $0x34] sm:$0xf]
  %v45 = vld [vmem:[%s1 + $0x38] sm:$0xf]
  %v46 = vld [vmem:[%s1 + $0x3c] sm:$0xf]
  %v47 = vld [vmem:[%s2] sm:$0x1]
  %v49 = vlaneseq
  %v50 = vshrl.u32 %v49, 7
  %v51 = vsub.s32 0, %v50
  %v52 = vrot.slane %v47, %v51
  %v70 = vunpack.c.l.b16 %v15
  %v71 = vunpack.c.l.b16 %v16
  %v72 = vunpack.c.l.b16 %v17
  %v73 = vunpack.c.l.b16 %v18
  %v74 = vunpack.c.l.b16 %v19
  %v75 = vunpack.c.l.b16 %v20
  %v76 = vunpack.c.l.b16 %v21
  %v77 = vunpack.c.l.b16 %v22
  %v78 = vunpack.c.l.b16 %v23
  %v79 = vunpack.c.l.b16 %v24
  %v80 = vunpack.c.l.b16 %v25
  %v81 = vunpack.c.l.b16 %v26
  %v82 = vunpack.c.l.b16 %v27
  %v83 = vunpack.c.l.b16 %v28
  %v84 = vunpack.c.l.b16 %v29
  %v85 = vunpack.c.l.b16 %v30
  %v86 = vpack.c.b16 %v71, %v70
  %v87 = vpack.c.b16 %v73, %v72
  %v88 = vpack.c.b16 %v75, %v74
  %v89 = vpack.c.b16 %v77, %v76
  %v90 = vpack.c.b16 %v79, %v78
  %v91 = vpack.c.b16 %v81, %v80
  %v92 = vpack.c.b16 %v83, %v82
  %v93 = vpack.c.b16 %v85, %v84
  %v118 = vunpack.c.l.b16 %v31
  %v119 = vunpack.c.l.b16 %v32
  %v120 = vunpack.c.l.b16 %v33
  %v121 = vunpack.c.l.b16 %v34
  %v122 = vunpack.c.l.b16 %v35
  %v123 = vunpack.c.l.b16 %v36
  %v124 = vunpack.c.l.b16 %v37
  %v125 = vunpack.c.l.b16 %v38
  %v126 = vunpack.c.l.b16 %v39
  %v127 = vunpack.c.l.b16 %v40
  %v128 = vunpack.c.l.b16 %v41
  %v129 = vunpack.c.l.b16 %v42
  %v130 = vunpack.c.l.b16 %v43
  %v131 = vunpack.c.l.b16 %v44
  %v132 = vunpack.c.l.b16 %v45
  %v133 = vunpack.c.l.b16 %v46
  %v134 = vpack.c.b16 %v119, %v118
  %v135 = vpack.c.b16 %v121, %v120
  %v136 = vpack.c.b16 %v123, %v122
  %v137 = vpack.c.b16 %v125, %v124
  %v138 = vpack.c.b16 %v127, %v126
  %v139 = vpack.c.b16 %v129, %v128
  %v140 = vpack.c.b16 %v131, %v130
  %v141 = vpack.c.b16 %v133, %v132
  %150 = vmatprep.subr.bf16.mxu0 0
  %151 = vmatpush1.bf16.msra.mxu0 %v141
  %152 = vmatprep.subr.bf16.mxu0 0
  %153 = vmatpush1.bf16.msra.mxu0 %v140
  %154 = vmatprep.subr.bf16.mxu0 0
  %155 = vmatpush1.bf16.msra.mxu0 %v139
  %156 = vmatprep.subr.bf16.mxu0 0
  %157 = vmatpush1.bf16.msra.mxu0 %v138
  %158 = vmatprep.subr.bf16.mxu0 0
  %159 = vmatpush1.bf16.msra.mxu0 %v137
  %160 = vmatprep.subr.bf16.mxu0 0
  %161 = vmatpush1.bf16.msra.mxu0 %v136
  %162 = vmatprep.subr.bf16.mxu0 0
  %163 = vmatpush1.bf16.msra.mxu0 %v135
  %164 = vmatprep.subr.bf16.mxu0 0
  %165 = vmatpush1.bf16.msra.mxu0 %v134
  %166 = vmatprep.subr.bf16.mxu0 0
  %167 = vmatpush2.bf16.msra.mxu0 0
  %168 = vmatprep.subr.bf16.mxu0 0
  %169 = vmatpush2.bf16.msra.mxu0 0
  %170 = vmatprep.subr.bf16.mxu0 0
  %171 = vmatpush2.bf16.msra.mxu0 0
  %172 = vmatprep.subr.bf16.mxu0 0
  %173 = vmatpush2.bf16.msra.mxu0 0
  %174 = vmatprep.subr.bf16.mxu0 0
  %175 = vmatpush2.bf16.msra.mxu0 0
  %176 = vmatprep.subr.bf16.mxu0 0
  %177 = vmatpush2.bf16.msra.mxu0 0
  %178 = vmatprep.subr.bf16.mxu0 0
  %179 = vmatpush2.bf16.msra.mxu0 0
  %180 = vmatprep.subr.bf16.mxu0 0
  %181 = vmatpush2.bf16.msra.mxu0 0
  %182 = vmatprep.mubr.bf16.mxu0 0
  %183 = vmatmul.mubr.bf16.gmra.mxu0 %v86
  %v184 = vpop.f32.mrf.mxu0
  %v185 = vadd.f32 %v52, %v184
  %v186 = vpop.f32.mrf.mxu0
  %v187 = vpop.f32.mrf.mxu0
  %v188 = vadd.f32 %v52, %v187
  %v189 = vpop.f32.mrf.mxu0
  %190 = vmatprep.mubr.bf16.mxu0 0
  %191 = vmatmul.mubr.bf16.gmra.mxu0 %v87
  %v192 = vpop.f32.mrf.mxu0
  %v193 = vadd.f32 %v52, %v192
  %v194 = vpop.f32.mrf.mxu0
  %v195 = vpop.f32.mrf.mxu0
  %v196 = vadd.f32 %v52, %v195
  %v197 = vpop.f32.mrf.mxu0
  %198 = vmatprep.mubr.bf16.mxu0 0
  %199 = vmatmul.mubr.bf16.gmra.mxu0 %v88
  %v200 = vpop.f32.mrf.mxu0
  %v201 = vadd.f32 %v52, %v200
  %v202 = vpop.f32.mrf.mxu0
  %v203 = vpop.f32.mrf.mxu0
  %v204 = vadd.f32 %v52, %v203
  %v205 = vpop.f32.mrf.mxu0
  %206 = vmatprep.mubr.bf16.mxu0 0
  %207 = vmatmul.mubr.bf16.gmra.mxu0 %v89
  %v208 = vpop.f32.mrf.mxu0
  %v209 = vadd.f32 %v52, %v208
  %v210 = vpop.f32.mrf.mxu0
  %v211 = vpop.f32.mrf.mxu0
  %v212 = vadd.f32 %v52, %v211
  %v213 = vpop.f32.mrf.mxu0
  %214 = vmatprep.mubr.bf16.mxu0 0
  %215 = vmatmul.mubr.bf16.gmra.mxu0 %v90
  %v216 = vpop.f32.mrf.mxu0
  %v217 = vadd.f32 %v52, %v216
  %v218 = vpop.f32.mrf.mxu0
  %v219 = vpop.f32.mrf.mxu0
  %v220 = vadd.f32 %v52, %v219
  %v221 = vpop.f32.mrf.mxu0
  %222 = vmatprep.mubr.bf16.mxu0 0
  %223 = vmatmul.mubr.bf16.gmra.mxu0 %v91
  %v224 = vpop.f32.mrf.mxu0
  %v225 = vadd.f32 %v52, %v224
  %v226 = vpop.f32.mrf.mxu0
  %v227 = vpop.f32.mrf.mxu0
  %v228 = vadd.f32 %v52, %v227
  %v229 = vpop.f32.mrf.mxu0
  %230 = vmatprep.mubr.bf16.mxu0 0
  %231 = vmatmul.mubr.bf16.gmra.mxu0 %v92
  %v232 = vpop.f32.mrf.mxu0
  %v233 = vadd.f32 %v52, %v232
  %v234 = vpop.f32.mrf.mxu0
  %v235 = vpop.f32.mrf.mxu0
  %v236 = vadd.f32 %v52, %v235
  %v237 = vpop.f32.mrf.mxu0
  %238 = vmatprep.mubr.bf16.mxu0 0
  %239 = vmatmul.mubr.bf16.gmra.mxu0 %v93
  %v240 = vpop.f32.mrf.mxu0
  %v241 = vadd.f32 %v52, %v240
  %v242 = vpop.f32.mrf.mxu0
  %v243 = vpop.f32.mrf.mxu0
  %v244 = vadd.f32 %v52, %v243
  %v245 = vpop.f32.mrf.mxu0
  %246 = vdwg.mxu0
  %v247 = vmax.f32 %v185, 0.0
  %v248 = vmax.f32 %v188, 0.0
  %v249 = vmax.f32 %v193, 0.0
  %v250 = vmax.f32 %v196, 0.0
  %v251 = vmax.f32 %v201, 0.0
  %v252 = vmax.f32 %v204, 0.0
  %v253 = vmax.f32 %v209, 0.0
  %v254 = vmax.f32 %v212, 0.0
  %v255 = vmax.f32 %v217, 0.0
  %v256 = vmax.f32 %v220, 0.0
  %v257 = vmax.f32 %v225, 0.0
  %v258 = vmax.f32 %v228, 0.0
  %v259 = vmax.f32 %v233, 0.0
  %v260 = vmax.f32 %v236, 0.0
  %v261 = vmax.f32 %v241, 0.0
  %v262 = vmax.f32 %v244, 0.0
  %v263 = vpack.c.bf16 %v248, %v247
  %v264 = vpack.c.bf16 %v250, %v249
  %v265 = vpack.c.bf16 %v252, %v251
  %v266 = vpack.c.bf16 %v254, %v253
  %v267 = vpack.c.bf16 %v256, %v255
  %v268 = vpack.c.bf16 %v258, %v257
  %v269 = vpack.c.bf16 %v260, %v259
  %v270 = vpack.c.bf16 %v262, %v261
  %v279 = vunpack.c.l.b16 %v263
  %v280 = vunpack.c.h.b16 %v263
  %v281 = vunpack.c.l.b16 %v264
  %v282 = vunpack.c.h.b16 %v264
  %v283 = vunpack.c.l.b16 %v265
  %v284 = vunpack.c.h.b16 %v265
  %v285 = vunpack.c.l.b16 %v266
  %v286 = vunpack.c.h.b16 %v266
  %v287 = vunpack.c.l.b16 %v267
  %v288 = vunpack.c.h.b16 %v267
  %v289 = vunpack.c.l.b16 %v268
  %v290 = vunpack.c.h.b16 %v268
  %v291 = vunpack.c.l.b16 %v269
  %v292 = vunpack.c.h.b16 %v269
  %v293 = vunpack.c.l.b16 %v270
  %v294 = vunpack.c.h.b16 %v270
  %v295 = vpack.c.b16 %v279, %v279
  %v296 = vpack.c.b16 %v280, %v280
  %v297 = vpack.c.b16 %v281, %v281
  %v298 = vpack.c.b16 %v282, %v282
  %v299 = vpack.c.b16 %v283, %v283
  %v300 = vpack.c.b16 %v284, %v284
  %v301 = vpack.c.b16 %v285, %v285
  %v302 = vpack.c.b16 %v286, %v286
  %v303 = vpack.c.b16 %v287, %v287
  %v304 = vpack.c.b16 %v288, %v288
  %v305 = vpack.c.b16 %v289, %v289
  %v306 = vpack.c.b16 %v290, %v290
  %v307 = vpack.c.b16 %v291, %v291
  %v308 = vpack.c.b16 %v292, %v292
  %v309 = vpack.c.b16 %v293, %v293
  %v310 = vpack.c.b16 %v294, %v294
  %327 = vst [vmem:[%s3] sm:$0xf] %v295
  %328 = vst [vmem:[%s3 + $0x4] sm:$0xf] %v296
  %329 = vst [vmem:[%s3 + $0x8] sm:$0xf] %v297
  %330 = vst [vmem:[%s3 + $0xc] sm:$0xf] %v298
  %331 = vst [vmem:[%s3 + $0x10] sm:$0xf] %v299
  %332 = vst [vmem:[%s3 + $0x14] sm:$0xf] %v300
  %333 = vst [vmem:[%s3 + $0x18] sm:$0xf] %v301
  %334 = vst [vmem:[%s3 + $0x1c] sm:$0xf] %v302
  %335 = vst [vmem:[%s3 + $0x20] sm:$0xf] %v303
  %336 = vst [vmem:[%s3 + $0x24] sm:$0xf] %v304
  %337 = vst [vmem:[%s3 + $0x28] sm:$0xf] %v305
  %338 = vst [vmem:[%s3 + $0x2c] sm:$0xf] %v306
  %339 = vst [vmem:[%s3 + $0x30] sm:$0xf] %v307
  %340 = vst [vmem:[%s3 + $0x34] sm:$0xf] %v308
  %341 = vst [vmem:[%s3 + $0x38] sm:$0xf] %v309
  %342 = vst [vmem:[%s3 + $0x3c] sm:$0xf] %v310
  // Predicated region
  $region14: #{gcn_forward.5} parent=0 // pred_check
    _
  $region15: #{gcn_forward.5} parent=0 // pred_check_branch
    %344 = sbr.rel (0) target = $region17
  $region16: #{gcn_forward.5} parent=0 // pred_region
    _
  $region17: #{gcn_forward.5} parent=0 // pred_fallthru
    _
  // Predicated region
  $region18: #{gcn_forward.5} parent=0 // pred_check
    _
  $region19: #{gcn_forward.5} parent=0 // pred_check_branch
    %346 = sbr.rel (0) target = $region21
  $region20: #{gcn_forward.5} parent=0 // pred_region
    _
  $region21: #{gcn_forward.5} parent=0 // pred_fallthru
    _

// kernel: gcn_forward.7
$region0: #{gcn_forward.7}
  #allocation0 [shape = 'u32[]', space=smem, size = 0x4, offset = 0x4, fixed_abs, tag = 'smem constant byte address 0x4 - core index']
  #allocation1 [shape = 'u32[144,128]{1,0:T(1,128)}', space=vmem, size = 0x12000, scoped, tag = 'internal scratch']
  %s0 = inlined_call_operand.vmem [shape: bf16[128,128], index: 0, kind: input, shape index: {}]
  %s1 = inlined_call_operand.vmem [shape: bf16[128,128], index: 1, kind: input, shape index: {}]
  %s2 = inlined_call_operand.vmem [shape: f32[1,128], index: 2, kind: input, shape index: {}]
  %s3 = inlined_call_operand.vmem [shape: f32[128,128], index: 3, kind: output, shape index: {}]
  %s4 = sld [smem:[#allocation0]]
  $region22: #{gcn_forward.7} parent=0
    _
  %s6 = ssub.s32 1, %s4
  %s7 = scalar_select 0, %s6, %s4
  // Predicated region
  $region2: #{gcn_forward.7} parent=0 // pred_check
    _
  $region3: #{gcn_forward.7} parent=0 // pred_check_branch
    %9 = sbr.rel (0) target = $region5
  $region4: #{gcn_forward.7} parent=0 // pred_region
    _
  $region5: #{gcn_forward.7} parent=0 // pred_fallthru
    _
  // Predicated region
  $region6: #{gcn_forward.7} parent=0 // pred_check
    _
  $region7: #{gcn_forward.7} parent=0 // pred_check_branch
    %11 = sbr.rel (0) target = $region9
  $region8: #{gcn_forward.7} parent=0 // pred_region
    _
  $region9: #{gcn_forward.7} parent=0 // pred_fallthru
    _
  // Predicated region
  $region10: #{gcn_forward.7} parent=0 // pred_check
    _
  $region11: #{gcn_forward.7} parent=0 // pred_check_branch
    %13 = sbr.rel (0) target = $region13
  $region12: #{gcn_forward.7} parent=0 // pred_region
    _
  $region13: #{gcn_forward.7} parent=0 // pred_fallthru
    _
  %v15 = vld [vmem:[%s0] sm:$0xf]
  %v16 = vld [vmem:[%s0 + $0x4] sm:$0xf]
  %v17 = vld [vmem:[%s0 + $0x8] sm:$0xf]
  %v18 = vld [vmem:[%s0 + $0xc] sm:$0xf]
  %v19 = vld [vmem:[%s0 + $0x10] sm:$0xf]
  %v20 = vld [vmem:[%s0 + $0x14] sm:$0xf]
  %v21 = vld [vmem:[%s0 + $0x18] sm:$0xf]
  %v22 = vld [vmem:[%s0 + $0x1c] sm:$0xf]
  %v23 = vld [vmem:[%s0 + $0x20] sm:$0xf]
  %v24 = vld [vmem:[%s0 + $0x24] sm:$0xf]
  %v25 = vld [vmem:[%s0 + $0x28] sm:$0xf]
  %v26 = vld [vmem:[%s0 + $0x2c] sm:$0xf]
  %v27 = vld [vmem:[%s0 + $0x30] sm:$0xf]
  %v28 = vld [vmem:[%s0 + $0x34] sm:$0xf]
  %v29 = vld [vmem:[%s0 + $0x38] sm:$0xf]
  %v30 = vld [vmem:[%s0 + $0x3c] sm:$0xf]
  %v31 = vld [vmem:[%s1] sm:$0xf]
  %v32 = vld [vmem:[%s1 + $0x4] sm:$0xf]
  %v33 = vld [vmem:[%s1 + $0x8] sm:$0xf]
  %v34 = vld [vmem:[%s1 + $0xc] sm:$0xf]
  %v35 = vld [vmem:[%s1 + $0x10] sm:$0xf]
  %v36 = vld [vmem:[%s1 + $0x14] sm:$0xf]
  %v37 = vld [vmem:[%s1 + $0x18] sm:$0xf]
  %v38 = vld [vmem:[%s1 + $0x1c] sm:$0xf]
  %v39 = vld [vmem:[%s1 + $0x20] sm:$0xf]
  %v40 = vld [vmem:[%s1 + $0x24] sm:$0xf]
  %v41 = vld [vmem:[%s1 + $0x28] sm:$0xf]
  %v42 = vld [vmem:[%s1 + $0x2c] sm:$0xf]
  %v43 = vld [vmem:[%s1 + $0x30] sm:$0xf]
  %v44 = vld [vmem:[%s1 + $0x34] sm:$0xf]
  %v45 = vld [vmem:[%s1 + $0x38] sm:$0xf]
  %v46 = vld [vmem:[%s1 + $0x3c] sm:$0xf]
  %v47 = vld [vmem:[%s2] sm:$0x1]
  %v49 = vlaneseq
  %v50 = vshrl.u32 %v49, 7
  %v51 = vsub.s32 0, %v50
  %v52 = vrot.slane %v47, %v51
  %v70 = vunpack.c.l.b16 %v15
  %v71 = vunpack.c.l.b16 %v16
  %v72 = vunpack.c.l.b16 %v17
  %v73 = vunpack.c.l.b16 %v18
  %v74 = vunpack.c.l.b16 %v19
  %v75 = vunpack.c.l.b16 %v20
  %v76 = vunpack.c.l.b16 %v21
  %v77 = vunpack.c.l.b16 %v22
  %v78 = vunpack.c.l.b16 %v23
  %v79 = vunpack.c.l.b16 %v24
  %v80 = vunpack.c.l.b16 %v25
  %v81 = vunpack.c.l.b16 %v26
  %v82 = vunpack.c.l.b16 %v27
  %v83 = vunpack.c.l.b16 %v28
  %v84 = vunpack.c.l.b16 %v29
  %v85 = vunpack.c.l.b16 %v30
  %v86 = vpack.c.b16 %v71, %v70
  %v87 = vpack.c.b16 %v73, %v72
  %v88 = vpack.c.b16 %v75, %v74
  %v89 = vpack.c.b16 %v77, %v76
  %v90 = vpack.c.b16 %v79, %v78
  %v91 = vpack.c.b16 %v81, %v80
  %v92 = vpack.c.b16 %v83, %v82
  %v93 = vpack.c.b16 %v85, %v84
  %v118 = vunpack.c.l.b16 %v31
  %v119 = vunpack.c.l.b16 %v32
  %v120 = vunpack.c.l.b16 %v33
  %v121 = vunpack.c.l.b16 %v34
  %v122 = vunpack.c.l.b16 %v35
  %v123 = vunpack.c.l.b16 %v36
  %v124 = vunpack.c.l.b16 %v37
  %v125 = vunpack.c.l.b16 %v38
  %v126 = vunpack.c.l.b16 %v39
  %v127 = vunpack.c.l.b16 %v40
  %v128 = vunpack.c.l.b16 %v41
  %v129 = vunpack.c.l.b16 %v42
  %v130 = vunpack.c.l.b16 %v43
  %v131 = vunpack.c.l.b16 %v44
  %v132 = vunpack.c.l.b16 %v45
  %v133 = vunpack.c.l.b16 %v46
  %v134 = vpack.c.b16 %v119, %v118
  %v135 = vpack.c.b16 %v121, %v120
  %v136 = vpack.c.b16 %v123, %v122
  %v137 = vpack.c.b16 %v125, %v124
  %v138 = vpack.c.b16 %v127, %v126
  %v139 = vpack.c.b16 %v129, %v128
  %v140 = vpack.c.b16 %v131, %v130
  %v141 = vpack.c.b16 %v133, %v132
  %150 = vmatprep.subr.bf16.mxu0 0
  %151 = vmatpush1.bf16.msra.mxu0 %v141
  %152 = vmatprep.subr.bf16.mxu0 0
  %153 = vmatpush1.bf16.msra.mxu0 %v140
  %154 = vmatprep.subr.bf16.mxu0 0
  %155 = vmatpush1.bf16.msra.mxu0 %v139
  %156 = vmatprep.subr.bf16.mxu0 0
  %157 = vmatpush1.bf16.msra.mxu0 %v138
  %158 = vmatprep.subr.bf16.mxu0 0
  %159 = vmatpush1.bf16.msra.mxu0 %v137
  %160 = vmatprep.subr.bf16.mxu0 0
  %161 = vmatpush1.bf16.msra.mxu0 %v136
  %162 = vmatprep.subr.bf16.mxu0 0
  %163 = vmatpush1.bf16.msra.mxu0 %v135
  %164 = vmatprep.subr.bf16.mxu0 0
  %165 = vmatpush1.bf16.msra.mxu0 %v134
  %166 = vmatprep.subr.bf16.mxu0 0
  %167 = vmatpush2.bf16.msra.mxu0 0
  %168 = vmatprep.subr.bf16.mxu0 0
  %169 = vmatpush2.bf16.msra.mxu0 0
  %170 = vmatprep.subr.bf16.mxu0 0
  %171 = vmatpush2.bf16.msra.mxu0 0
  %172 = vmatprep.subr.bf16.mxu0 0
  %173 = vmatpush2.bf16.msra.mxu0 0
  %174 = vmatprep.subr.bf16.mxu0 0
  %175 = vmatpush2.bf16.msra.mxu0 0
  %176 = vmatprep.subr.bf16.mxu0 0
  %177 = vmatpush2.bf16.msra.mxu0 0
  %178 = vmatprep.subr.bf16.mxu0 0
  %179 = vmatpush2.bf16.msra.mxu0 0
  %180 = vmatprep.subr.bf16.mxu0 0
  %181 = vmatpush2.bf16.msra.mxu0 0
  %182 = vmatprep.mubr.bf16.mxu0 0
  %183 = vmatmul.mubr.bf16.gmra.mxu0 %v86
  %v184 = vpop.f32.mrf.mxu0
  %v185 = vadd.f32 %v52, %v184
  %v186 = vpop.f32.mrf.mxu0
  %v187 = vpop.f32.mrf.mxu0
  %v188 = vadd.f32 %v52, %v187
  %v189 = vpop.f32.mrf.mxu0
  %190 = vmatprep.mubr.bf16.mxu0 0
  %191 = vmatmul.mubr.bf16.gmra.mxu0 %v87
  %v192 = vpop.f32.mrf.mxu0
  %v193 = vadd.f32 %v52, %v192
  %v194 = vpop.f32.mrf.mxu0
  %v195 = vpop.f32.mrf.mxu0
  %v196 = vadd.f32 %v52, %v195
  %v197 = vpop.f32.mrf.mxu0
  %198 = vmatprep.mubr.bf16.mxu0 0
  %199 = vmatmul.mubr.bf16.gmra.mxu0 %v88
  %v200 = vpop.f32.mrf.mxu0
  %v201 = vadd.f32 %v52, %v200
  %v202 = vpop.f32.mrf.mxu0
  %v203 = vpop.f32.mrf.mxu0
  %v204 = vadd.f32 %v52, %v203
  %v205 = vpop.f32.mrf.mxu0
  %206 = vmatprep.mubr.bf16.mxu0 0
  %207 = vmatmul.mubr.bf16.gmra.mxu0 %v89
  %v208 = vpop.f32.mrf.mxu0
  %v209 = vadd.f32 %v52, %v208
  %v210 = vpop.f32.mrf.mxu0
  %v211 = vpop.f32.mrf.mxu0
  %v212 = vadd.f32 %v52, %v211
  %v213 = vpop.f32.mrf.mxu0
  %214 = vmatprep.mubr.bf16.mxu0 0
  %215 = vmatmul.mubr.bf16.gmra.mxu0 %v90
  %v216 = vpop.f32.mrf.mxu0
  %v217 = vadd.f32 %v52, %v216
  %v218 = vpop.f32.mrf.mxu0
  %v219 = vpop.f32.mrf.mxu0
  %v220 = vadd.f32 %v52, %v219
  %v221 = vpop.f32.mrf.mxu0
  %222 = vmatprep.mubr.bf16.mxu0 0
  %223 = vmatmul.mubr.bf16.gmra.mxu0 %v91
  %v224 = vpop.f32.mrf.mxu0
  %v225 = vadd.f32 %v52, %v224
  %v226 = vpop.f32.mrf.mxu0
  %v227 = vpop.f32.mrf.mxu0
  %v228 = vadd.f32 %v52, %v227
  %v229 = vpop.f32.mrf.mxu0
  %230 = vmatprep.mubr.bf16.mxu0 0
  %231 = vmatmul.mubr.bf16.gmra.mxu0 %v92
  %v232 = vpop.f32.mrf.mxu0
  %v233 = vadd.f32 %v52, %v232
  %v234 = vpop.f32.mrf.mxu0
  %v235 = vpop.f32.mrf.mxu0
  %v236 = vadd.f32 %v52, %v235
  %v237 = vpop.f32.mrf.mxu0
  %238 = vmatprep.mubr.bf16.mxu0 0
  %239 = vmatmul.mubr.bf16.gmra.mxu0 %v93
  %v240 = vpop.f32.mrf.mxu0
  %v241 = vadd.f32 %v52, %v240
  %v242 = vpop.f32.mrf.mxu0
  %v243 = vpop.f32.mrf.mxu0
  %v244 = vadd.f32 %v52, %v243
  %v245 = vpop.f32.mrf.mxu0
  %246 = vdwg.mxu0
  %247 = vst [vmem:[%s3] sm:$0xff] %v185
  %248 = vst [vmem:[%s3 + $0x8] sm:$0xff] %v188
  %249 = vst [vmem:[%s3 + $0x10] sm:$0xff] %v193
  %250 = vst [vmem:[%s3 + $0x18] sm:$0xff] %v196
  %251 = vst [vmem:[%s3 + $0x20] sm:$0xff] %v201
  %252 = vst [vmem:[%s3 + $0x28] sm:$0xff] %v204
  %253 = vst [vmem:[%s3 + $0x30] sm:$0xff] %v209
  %254 = vst [vmem:[%s3 + $0x38] sm:$0xff] %v212
  %255 = vst [vmem:[%s3 + $0x40] sm:$0xff] %v217
  %256 = vst [vmem:[%s3 + $0x48] sm:$0xff] %v220
  %257 = vst [vmem:[%s3 + $0x50] sm:$0xff] %v225
  %258 = vst [vmem:[%s3 + $0x58] sm:$0xff] %v228
  %259 = vst [vmem:[%s3 + $0x60] sm:$0xff] %v233
  %260 = vst [vmem:[%s3 + $0x68] sm:$0xff] %v236
  %261 = vst [vmem:[%s3 + $0x70] sm:$0xff] %v241
  %262 = vst [vmem:[%s3 + $0x78] sm:$0xff] %v244
  // Predicated region
  $region14: #{gcn_forward.7} parent=0 // pred_check
    _
  $region15: #{gcn_forward.7} parent=0 // pred_check_branch
    %264 = sbr.rel (0) target = $region17
  $region16: #{gcn_forward.7} parent=0 // pred_region
    _
  $region17: #{gcn_forward.7} parent=0 // pred_fallthru
    _
  // Predicated region
  $region18: #{gcn_forward.7} parent=0 // pred_check
    _
  $region19: #{gcn_forward.7} parent=0 // pred_check_branch
    %266 = sbr.rel (0) target = $region21
  $region20: #{gcn_forward.7} parent=0 // pred_region
    _
  $region21: #{gcn_forward.7} parent=0 // pred_fallthru
    _

// kernel: gcn_forward.4
$region0: #{gcn_forward.4}
  #allocation0 [shape = 'u32[]', space=smem, size = 0x4, offset = 0x4, fixed_abs, tag = 'smem constant byte address 0x4 - core index']
  #allocation1 [shape = 'u32[144,128]{1,0:T(1,128)}', space=vmem, size = 0x12000, scoped, tag = 'internal scratch']
  %s0 = inlined_call_operand.vmem [shape: bf16[128,128], index: 0, kind: input, shape index: {}]
  %s1 = inlined_call_operand.vmem [shape: bf16[128,128], index: 1, kind: input, shape index: {}]
  %s2 = inlined_call_operand.vmem [shape: bf16[128,128], index: 2, kind: output, shape index: {}]
  %s3 = sld [smem:[#allocation0]]
  $region18: #{gcn_forward.4} parent=0
    _
  %s5 = ssub.s32 1, %s3
  %s6 = scalar_select 0, %s5, %s3
  // Predicated region
  $region2: #{gcn_forward.4} parent=0 // pred_check
    _
  $region3: #{gcn_forward.4} parent=0 // pred_check_branch
    %8 = sbr.rel (0) target = $region5
  $region4: #{gcn_forward.4} parent=0 // pred_region
    _
  $region5: #{gcn_forward.4} parent=0 // pred_fallthru
    _
  // Predicated region
  $region6: #{gcn_forward.4} parent=0 // pred_check
    _
  $region7: #{gcn_forward.4} parent=0 // pred_check_branch
    %10 = sbr.rel (0) target = $region9
  $region8: #{gcn_forward.4} parent=0 // pred_region
    _
  $region9: #{gcn_forward.4} parent=0 // pred_fallthru
    _
  %v12 = vld [vmem:[%s0] sm:$0xf]
  %v13 = vld [vmem:[%s0 + $0x4] sm:$0xf]
  %v14 = vld [vmem:[%s0 + $0x8] sm:$0xf]
  %v15 = vld [vmem:[%s0 + $0xc] sm:$0xf]
  %v16 = vld [vmem:[%s0 + $0x10] sm:$0xf]
  %v17 = vld [vmem:[%s0 + $0x14] sm:$0xf]
  %v18 = vld [vmem:[%s0 + $0x18] sm:$0xf]
  %v19 = vld [vmem:[%s0 + $0x1c] sm:$0xf]
  %v20 = vld [vmem:[%s0 + $0x20] sm:$0xf]
  %v21 = vld [vmem:[%s0 + $0x24] sm:$0xf]
  %v22 = vld [vmem:[%s0 + $0x28] sm:$0xf]
  %v23 = vld [vmem:[%s0 + $0x2c] sm:$0xf]
  %v24 = vld [vmem:[%s0 + $0x30] sm:$0xf]
  %v25 = vld [vmem:[%s0 + $0x34] sm:$0xf]
  %v26 = vld [vmem:[%s0 + $0x38] sm:$0xf]
  %v27 = vld [vmem:[%s0 + $0x3c] sm:$0xf]
  %v28 = vld [vmem:[%s1] sm:$0xf]
  %v29 = vld [vmem:[%s1 + $0x4] sm:$0xf]
  %v30 = vld [vmem:[%s1 + $0x8] sm:$0xf]
  %v31 = vld [vmem:[%s1 + $0xc] sm:$0xf]
  %v32 = vld [vmem:[%s1 + $0x10] sm:$0xf]
  %v33 = vld [vmem:[%s1 + $0x14] sm:$0xf]
  %v34 = vld [vmem:[%s1 + $0x18] sm:$0xf]
  %v35 = vld [vmem:[%s1 + $0x1c] sm:$0xf]
  %v36 = vld [vmem:[%s1 + $0x20] sm:$0xf]
  %v37 = vld [vmem:[%s1 + $0x24] sm:$0xf]
  %v38 = vld [vmem:[%s1 + $0x28] sm:$0xf]
  %v39 = vld [vmem:[%s1 + $0x2c] sm:$0xf]
  %v40 = vld [vmem:[%s1 + $0x30] sm:$0xf]
  %v41 = vld [vmem:[%s1 + $0x34] sm:$0xf]
  %v42 = vld [vmem:[%s1 + $0x38] sm:$0xf]
  %v43 = vld [vmem:[%s1 + $0x3c] sm:$0xf]
  %v60 = vunpack.c.l.b16 %v12
  %v61 = vunpack.c.l.b16 %v13
  %v62 = vunpack.c.l.b16 %v14
  %v63 = vunpack.c.l.b16 %v15
  %v64 = vunpack.c.l.b16 %v16
  %v65 = vunpack.c.l.b16 %v17
  %v66 = vunpack.c.l.b16 %v18
  %v67 = vunpack.c.l.b16 %v19
  %v68 = vunpack.c.l.b16 %v20
  %v69 = vunpack.c.l.b16 %v21
  %v70 = vunpack.c.l.b16 %v22
  %v71 = vunpack.c.l.b16 %v23
  %v72 = vunpack.c.l.b16 %v24
  %v73 = vunpack.c.l.b16 %v25
  %v74 = vunpack.c.l.b16 %v26
  %v75 = vunpack.c.l.b16 %v27
  %v76 = vpack.c.b16 %v61, %v60
  %v77 = vpack.c.b16 %v63, %v62
  %v78 = vpack.c.b16 %v65, %v64
  %v79 = vpack.c.b16 %v67, %v66
  %v80 = vpack.c.b16 %v69, %v68
  %v81 = vpack.c.b16 %v71, %v70
  %v82 = vpack.c.b16 %v73, %v72
  %v83 = vpack.c.b16 %v75, %v74
  %v108 = vunpack.c.l.b16 %v28
  %v109 = vunpack.c.l.b16 %v29
  %v110 = vunpack.c.l.b16 %v30
  %v111 = vunpack.c.l.b16 %v31
  %v112 = vunpack.c.l.b16 %v32
  %v113 = vunpack.c.l.b16 %v33
  %v114 = vunpack.c.l.b16 %v34
  %v115 = vunpack.c.l.b16 %v35
  %v116 = vunpack.c.l.b16 %v36
  %v117 = vunpack.c.l.b16 %v37
  %v118 = vunpack.c.l.b16 %v38
  %v119 = vunpack.c.l.b16 %v39
  %v120 = vunpack.c.l.b16 %v40
  %v121 = vunpack.c.l.b16 %v41
  %v122 = vunpack.c.l.b16 %v42
  %v123 = vunpack.c.l.b16 %v43
  %v124 = vpack.c.b16 %v109, %v108
  %v125 = vpack.c.b16 %v111, %v110
  %v126 = vpack.c.b16 %v113, %v112
  %v127 = vpack.c.b16 %v115, %v114
  %v128 = vpack.c.b16 %v117, %v116
  %v129 = vpack.c.b16 %v119, %v118
  %v130 = vpack.c.b16 %v121, %v120
  %v131 = vpack.c.b16 %v123, %v122
  %140 = vmatprep.subr.bf16.mxu0 0
  %141 = vmatpush1.bf16.msra.mxu0 %v131
  %142 = vmatprep.subr.bf16.mxu0 0
  %143 = vmatpush1.bf16.msra.mxu0 %v130
  %144 = vmatprep.subr.bf16.mxu0 0
  %145 = vmatpush1.bf16.msra.mxu0 %v129
  %146 = vmatprep.subr.bf16.mxu0 0
  %147 = vmatpush1.bf16.msra.mxu0 %v128
  %148 = vmatprep.subr.bf16.mxu0 0
  %149 = vmatpush1.bf16.msra.mxu0 %v127
  %150 = vmatprep.subr.bf16.mxu0 0
  %151 = vmatpush1.bf16.msra.mxu0 %v126
  %152 = vmatprep.subr.bf16.mxu0 0
  %153 = vmatpush1.bf16.msra.mxu0 %v125
  %154 = vmatprep.subr.bf16.mxu0 0
  %155 = vmatpush1.bf16.msra.mxu0 %v124
  %156 = vmatprep.subr.bf16.mxu0 0
  %157 = vmatpush2.bf16.msra.mxu0 0
  %158 = vmatprep.subr.bf16.mxu0 0
  %159 = vmatpush2.bf16.msra.mxu0 0
  %160 = vmatprep.subr.bf16.mxu0 0
  %161 = vmatpush2.bf16.msra.mxu0 0
  %162 = vmatprep.subr.bf16.mxu0 0
  %163 = vmatpush2.bf16.msra.mxu0 0
  %164 = vmatprep.subr.bf16.mxu0 0
  %165 = vmatpush2.bf16.msra.mxu0 0
  %166 = vmatprep.subr.bf16.mxu0 0
  %167 = vmatpush2.bf16.msra.mxu0 0
  %168 = vmatprep.subr.bf16.mxu0 0
  %169 = vmatpush2.bf16.msra.mxu0 0
  %170 = vmatprep.subr.bf16.mxu0 0
  %171 = vmatpush2.bf16.msra.mxu0 0
  %172 = vmatprep.mubr.bf16.mxu0 0
  %173 = vmatmul.mubr.bf16.gmra.mxu0 %v76
  %v174 = vpop.f32.mrf.mxu0
  %v175 = vadd.f32 0.0, %v174
  %v176 = vpop.f32.mrf.mxu0
  %v177 = vpop.f32.mrf.mxu0
  %v178 = vadd.f32 0.0, %v177
  %v179 = vpop.f32.mrf.mxu0
  %180 = vmatprep.mubr.bf16.mxu0 0
  %181 = vmatmul.mubr.bf16.gmra.mxu0 %v77
  %v182 = vpop.f32.mrf.mxu0
  %v183 = vadd.f32 0.0, %v182
  %v184 = vpop.f32.mrf.mxu0
  %v185 = vpop.f32.mrf.mxu0
  %v186 = vadd.f32 0.0, %v185
  %v187 = vpop.f32.mrf.mxu0
  %188 = vmatprep.mubr.bf16.mxu0 0
  %189 = vmatmul.mubr.bf16.gmra.mxu0 %v78
  %v190 = vpop.f32.mrf.mxu0
  %v191 = vadd.f32 0.0, %v190
  %v192 = vpop.f32.mrf.mxu0
  %v193 = vpop.f32.mrf.mxu0
  %v194 = vadd.f32 0.0, %v193
  %v195 = vpop.f32.mrf.mxu0
  %196 = vmatprep.mubr.bf16.mxu0 0
  %197 = vmatmul.mubr.bf16.gmra.mxu0 %v79
  %v198 = vpop.f32.mrf.mxu0
  %v199 = vadd.f32 0.0, %v198
  %v200 = vpop.f32.mrf.mxu0
  %v201 = vpop.f32.mrf.mxu0
  %v202 = vadd.f32 0.0, %v201
  %v203 = vpop.f32.mrf.mxu0
  %204 = vmatprep.mubr.bf16.mxu0 0
  %205 = vmatmul.mubr.bf16.gmra.mxu0 %v80
  %v206 = vpop.f32.mrf.mxu0
  %v207 = vadd.f32 0.0, %v206
  %v208 = vpop.f32.mrf.mxu0
  %v209 = vpop.f32.mrf.mxu0
  %v210 = vadd.f32 0.0, %v209
  %v211 = vpop.f32.mrf.mxu0
  %212 = vmatprep.mubr.bf16.mxu0 0
  %213 = vmatmul.mubr.bf16.gmra.mxu0 %v81
  %v214 = vpop.f32.mrf.mxu0
  %v215 = vadd.f32 0.0, %v214
  %v216 = vpop.f32.mrf.mxu0
  %v217 = vpop.f32.mrf.mxu0
  %v218 = vadd.f32 0.0, %v217
  %v219 = vpop.f32.mrf.mxu0
  %220 = vmatprep.mubr.bf16.mxu0 0
  %221 = vmatmul.mubr.bf16.gmra.mxu0 %v82
  %v222 = vpop.f32.mrf.mxu0
  %v223 = vadd.f32 0.0, %v222
  %v224 = vpop.f32.mrf.mxu0
  %v225 = vpop.f32.mrf.mxu0
  %v226 = vadd.f32 0.0, %v225
  %v227 = vpop.f32.mrf.mxu0
  %228 = vmatprep.mubr.bf16.mxu0 0
  %229 = vmatmul.mubr.bf16.gmra.mxu0 %v83
  %v230 = vpop.f32.mrf.mxu0
  %v231 = vadd.f32 0.0, %v230
  %v232 = vpop.f32.mrf.mxu0
  %v233 = vpop.f32.mrf.mxu0
  %v234 = vadd.f32 0.0, %v233
  %v235 = vpop.f32.mrf.mxu0
  %236 = vdwg.mxu0
  %v237 = vpack.c.bf16 %v178, %v175
  %v238 = vpack.c.bf16 %v186, %v183
  %v239 = vpack.c.bf16 %v194, %v191
  %v240 = vpack.c.bf16 %v202, %v199
  %v241 = vpack.c.bf16 %v210, %v207
  %v242 = vpack.c.bf16 %v218, %v215
  %v243 = vpack.c.bf16 %v226, %v223
  %v244 = vpack.c.bf16 %v234, %v231
  %v253 = vunpack.c.l.b16 %v237
  %v254 = vunpack.c.h.b16 %v237
  %v255 = vunpack.c.l.b16 %v238
  %v256 = vunpack.c.h.b16 %v238
  %v257 = vunpack.c.l.b16 %v239
  %v258 = vunpack.c.h.b16 %v239
  %v259 = vunpack.c.l.b16 %v240
  %v260 = vunpack.c.h.b16 %v240
  %v261 = vunpack.c.l.b16 %v241
  %v262 = vunpack.c.h.b16 %v241
  %v263 = vunpack.c.l.b16 %v242
  %v264 = vunpack.c.h.b16 %v242
  %v265 = vunpack.c.l.b16 %v243
  %v266 = vunpack.c.h.b16 %v243
  %v267 = vunpack.c.l.b16 %v244
  %v268 = vunpack.c.h.b16 %v244
  %v269 = vpack.c.b16 %v253, %v253
  %v270 = vpack.c.b16 %v254, %v254
  %v271 = vpack.c.b16 %v255, %v255
  %v272 = vpack.c.b16 %v256, %v256
  %v273 = vpack.c.b16 %v257, %v257
  %v274 = vpack.c.b16 %v258, %v258
  %v275 = vpack.c.b16 %v259, %v259
  %v276 = vpack.c.b16 %v260, %v260
  %v277 = vpack.c.b16 %v261, %v261
  %v278 = vpack.c.b16 %v262, %v262
  %v279 = vpack.c.b16 %v263, %v263
  %v280 = vpack.c.b16 %v264, %v264
  %v281 = vpack.c.b16 %v265, %v265
  %v282 = vpack.c.b16 %v266, %v266
  %v283 = vpack.c.b16 %v267, %v267
  %v284 = vpack.c.b16 %v268, %v268
  %301 = vst [vmem:[%s2] sm:$0xf] %v269
  %302 = vst [vmem:[%s2 + $0x4] sm:$0xf] %v270
  %303 = vst [vmem:[%s2 + $0x8] sm:$0xf] %v271
  %304 = vst [vmem:[%s2 + $0xc] sm:$0xf] %v272
  %305 = vst [vmem:[%s2 + $0x10] sm:$0xf] %v273
  %306 = vst [vmem:[%s2 + $0x14] sm:$0xf] %v274
  %307 = vst [vmem:[%s2 + $0x18] sm:$0xf] %v275
  %308 = vst [vmem:[%s2 + $0x1c] sm:$0xf] %v276
  %309 = vst [vmem:[%s2 + $0x20] sm:$0xf] %v277
  %310 = vst [vmem:[%s2 + $0x24] sm:$0xf] %v278
  %311 = vst [vmem:[%s2 + $0x28] sm:$0xf] %v279
  %312 = vst [vmem:[%s2 + $0x2c] sm:$0xf] %v280
  %313 = vst [vmem:[%s2 + $0x30] sm:$0xf] %v281
  %314 = vst [vmem:[%s2 + $0x34] sm:$0xf] %v282
  %315 = vst [vmem:[%s2 + $0x38] sm:$0xf] %v283
  %316 = vst [vmem:[%s2 + $0x3c] sm:$0xf] %v284
  // Predicated region
  $region10: #{gcn_forward.4} parent=0 // pred_check
    _
  $region11: #{gcn_forward.4} parent=0 // pred_check_branch
    %318 = sbr.rel (0) target = $region13
  $region12: #{gcn_forward.4} parent=0 // pred_region
    _
  $region13: #{gcn_forward.4} parent=0 // pred_fallthru
    _
  // Predicated region
  $region14: #{gcn_forward.4} parent=0 // pred_check
    _
  $region15: #{gcn_forward.4} parent=0 // pred_check_branch
    %320 = sbr.rel (0) target = $region17
  $region16: #{gcn_forward.4} parent=0 // pred_region
    _
  $region17: #{gcn_forward.4} parent=0 // pred_fallthru
    _

</llo_original>
